<compile_context>
chip_gen: v5e
topology: v5e:2x2
jax: 0.10.0
libtpu: 0.0.40
codegen_flags: <defaults>
</compile_context>

<pallas_src>
import functools

import jax
import jax.numpy as jnp
from jax.experimental import pallas as pl
from jax.experimental.pallas import tpu as pltpu  # noqa: F401  (TPU backend)

LANE = 128   # TPU lane width
PATCH = 8    # patch size of the stub visual encoder


def _round_up(x, m):
    return ((x + m - 1) // m) * m


# ----------------------------------------------------------------------------
# Fused Pallas kernel: image projection + text pool+projection
# ----------------------------------------------------------------------------
def clip_project_kernel(pooled_img_ref, w_img_ref, tokens_ref, w_txt_ref,
                        img_out_ref, txt_out_ref):
    """
    pooled_img : [B, Dp]    bf16  patch-mean-pooled image features
    w_img      : [Dp, Ep]   bf16  patch projection (E zero-padded to lane width)
    tokens     : [B, S, Dt] bf16  token embeddings (Dt zero-padded to lane width)
    w_txt      : [Dt, Ep]   bf16  text projection
    outputs    : img [B, Ep] f32 ; txt [B, Ep] f32
    """
    # Image branch: single MXU matmul, bf16 inputs, f32 accumulation.
    img_out_ref[...] = jnp.dot(
        pooled_img_ref[...], w_img_ref[...],
        preferred_element_type=jnp.float32).astype(img_out_ref.dtype)

    # Text branch: mean-pool over the sequence axis.  Inputs arrive as bf16
    # (halved DMA); upcast in-register and accumulate in f32 so v5e's
    # no-bf16-VPU path is never exercised.  axis=1 keeps the reduction on the
    # sublane axis (VALU adds + one XLU combine), not the lane axis.
    inv_s = 1.0 / tokens_ref.shape[1]
    pooled_txt = jnp.sum(tokens_ref[...].astype(jnp.float32), axis=1) * inv_s
    txt_out_ref[...] = jnp.dot(
        pooled_txt.astype(jnp.bfloat16), w_txt_ref[...],
        preferred_element_type=jnp.float32).astype(txt_out_ref.dtype)


# ----------------------------------------------------------------------------
# Wrapper around pallas_call
# ----------------------------------------------------------------------------
def clip_project_pallas(pooled_img, w_img_p, tokens, w_txt_p):
    B, Dp = pooled_img.shape
    Bt, S, Dt = tokens.shape
    Ep = w_img_p.shape[1]
    assert w_img_p.shape == (Dp, Ep) and w_txt_p.shape == (Dt, Ep)

    # At these toy sizes a single grid-less block is optimal (everything fits
    # VMEM many times over).  Scaling plan for real CLIP sizes:
    #   * grid = (B // tm, P_or_S // tk) with dimension_semantics =
    #     ("parallel", "arbitrary") so v7x's 2 TensorCores split the batch
    #     axis and the patch/sequence axis streams into a persistent f32 VMEM
    #     accumulator (pl.when init/finalize),
    #   * tm >= 256 (v6e/v7x 2x256x256 MXU; >=128 suffices on v5e),
    #   * size blocks against v7x's 64 MiB physical / 32 MiB default scoped
    #     VMEM with 2x double-buffering per input, and set vmem_limit_bytes
    #     explicitly (a v6e-tuned tile will not fit v7x).
    img_f, txt_f = pl.pallas_call(
        clip_project_kernel,
        out_shape=(
            jax.ShapeDtypeStruct((B, Ep), jnp.float32),
            jax.ShapeDtypeStruct((Bt, Ep), jnp.float32),
        ),
        in_specs=[
            pl.BlockSpec((B, Dp), lambda: (0, 0)),
            pl.BlockSpec((Dp, Ep), lambda: (0, 0)),
            pl.BlockSpec((Bt, S, Dt), lambda: (0, 0, 0)),
            pl.BlockSpec((Dt, Ep), lambda: (0, 0)),
        ],
        out_specs=(
            pl.BlockSpec((B, Ep), lambda: (0, 0)),
            pl.BlockSpec((Bt, Ep), lambda: (0, 0)),
        ),
    )(pooled_img, w_img_p, tokens, w_txt_p)
    return img_f, txt_f


# ----------------------------------------------------------------------------
# Parameters: padding + bf16 cast done ONCE here (not per forward call)
# ----------------------------------------------------------------------------
def make_params(key, *, C, ps, embed_dim, vocab, text_width):
    k1, k2, k3 = jax.random.split(key, 3)
    patch_dim = C * ps * ps
    ep = _round_up(embed_dim, LANE)       # lane-dense output width
    dtp = _round_up(text_width, LANE)     # lane-dense token feature width

    # conv1-equivalent patch projection [C*ps*ps, E] -> pad E, cast bf16.
    w_img = jax.random.normal(k1, (patch_dim, embed_dim), jnp.float32) * 0.02
    w_img_p = jnp.pad(w_img, ((0, 0), (0, ep - embed_dim))).astype(jnp.bfloat16)

    # token embedding table [vocab, Dt] -> pad Dt once, store bf16 so the
    # per-call gather already yields lane-dense bf16 tokens.
    tok_emb = jax.random.normal(k2, (vocab, text_width), jnp.float32) * 0.02
    tok_emb_p = jnp.pad(tok_emb, ((0, 0), (0, dtp - text_width))).astype(jnp.bfloat16)

    # text projection [Dt, E] -> pad both dims, cast bf16 (padded rows/cols
    # are zero, so the matmul result over the real E columns is unchanged).
    w_txt = jax.random.normal(k3, (text_width, embed_dim), jnp.float32) * 0.02
    w_txt_p = jnp.pad(
        w_txt, ((0, dtp - text_width), (0, ep - embed_dim))).astype(jnp.bfloat16)

    # logit_scale = nn.Parameter(torch.ones([]))
    logit_scale = jnp.ones((), jnp.float32)
    return dict(w_img=w_img_p, tok_emb=tok_emb_p, w_txt=w_txt_p,
                logit_scale=logit_scale)


# ----------------------------------------------------------------------------
# Classifier forward (glue fused under jit, hot path in the Pallas kernel)
# ----------------------------------------------------------------------------
def classifier_forward(params, image, text, *, embed_dim):
    B, C, H, W = image.shape
    hp, wp = H // PATCH, W // PATCH

    # Patch-mean directly from NCHW: mean over the (Hp, Wp) patch-grid axes of
    # the 6-D view equals the mean over patches of the flattened (C, ps, ps)
    # patch content.  No [B, P, C*ps*ps] tensor or transpose copy ever hits
    # HBM; the kernel DMAs only [B, C*ps*ps].
    pooled_img = (image.reshape(B, C, hp, PATCH, wp, PATCH)
                       .mean(axis=(2, 4))
                       .reshape(B, C * PATCH * PATCH)
                       .astype(jnp.bfloat16))

    # Token embedding gather (lane-dense bf16 table, padded once at init).
    # TODO(synk): gather kept in JAX; a Pallas DMA-gather is overkill here.
    tokens = params["tok_emb"][text]                         # [B, S, Dtp] bf16

    img_f, txt_f = clip_project_pallas(
        pooled_img, params["w_img"], tokens, params["w_txt"])

    # T = exp(logit_scale): scalar, computed in plain JAX (fused by jit)
    # instead of a padded (1,1) VMEM output block in the kernel.
    T = jnp.exp(params["logit_scale"])

    # Slice back only when E is not lane-aligned (real CLIP 512/768 skip this).
    if img_f.shape[1] != embed_dim:
        img_f = img_f[:, :embed_dim]
        txt_f = txt_f[:, :embed_dim]
    return img_f, txt_f, T


# ----------------------------------------------------------------------------
if __name__ == "__main__":
    key = jax.random.PRNGKey(0)
    k_img, k_txt, k_par = jax.random.split(key, 3)

    # small shapes consistent with the module's forward
    B, C, H, W = 2, 4, 16, 16       # image batch, NCHW
    S, vocab = 8, 64                # text: [B, S] token ids
    embed_dim, text_width = 32, 32  # config.MODEL.SPEC.EMBED_DIM

    image = jax.random.normal(k_img, (B, C, H, W), jnp.float32)
    text = jax.random.randint(k_txt, (B, S), 0, vocab, jnp.int32)
    params = make_params(k_par, C=C, ps=PATCH, embed_dim=embed_dim,
                         vocab=vocab, text_width=text_width)

    # One jitted dispatch for the whole forward (glue + kernel + slicing).
    forward = jax.jit(functools.partial(classifier_forward, embed_dim=embed_dim))

    feats_img, feats_txt, T = forward(params, image, text)
    jax.block_until_ready((feats_img, feats_txt, T))

    assert feats_img.shape == (B, embed_dim)
    assert feats_txt.shape == (B, embed_dim)
    assert T.shape == ()
    print("KERNEL_OK")
</pallas_src>

<mosaic_0001>
module attributes {stable_mosaic.version = 11 : i64} {
  func.func @clip_project_kernel(%arg0: memref<2x256xbf16, #tpu.memory_space<vmem>>, %arg1: memref<256x128xbf16, #tpu.memory_space<vmem>>, %arg2: memref<2x8x128xbf16, #tpu.memory_space<vmem>>, %arg3: memref<128x128xbf16, #tpu.memory_space<vmem>>, %arg4: memref<2x128xf32, #tpu.memory_space<vmem>>, %arg5: memref<2x128xf32, #tpu.memory_space<vmem>>) attributes {dimension_semantics = [], scalar_prefetch = 0 : i64, scratch_operands = 0 : i64, tpu.core_type = #tpu.core_type<tc>} {
    %c0 = arith.constant 0 : index
    %c0_0 = arith.constant 0 : index
    %0 = vector.load %arg0[%c0, %c0_0] : memref<2x256xbf16, #tpu.memory_space<vmem>>, vector<2x256xbf16>
    %c0_1 = arith.constant 0 : index
    %c0_2 = arith.constant 0 : index
    %1 = vector.load %arg1[%c0_1, %c0_2] : memref<256x128xbf16, #tpu.memory_space<vmem>>, vector<256x128xbf16>
    %cst = arith.constant dense<0.000000e+00> : vector<2x128xf32>
    %2 = tpu.matmul %0, %1, %cst {dimension_numbers = #tpu.dot_dimension_numbers<[1], [0], [0], [1], [0, 0, 1, 1], [], []>} : vector<2x256xbf16>, vector<256x128xbf16>, vector<2x128xf32> -> vector<2x128xf32>
    %c0_3 = arith.constant 0 : index
    %c0_4 = arith.constant 0 : index
    %3 = vector.load %arg4[%c0_3, %c0_4] : memref<2x128xf32, #tpu.memory_space<vmem>>, vector<2x128xf32>
    tpu.vector_store %arg4[%c0_3, %c0_4], %2 {strides = array<i32>} : memref<2x128xf32, #tpu.memory_space<vmem>>, vector<2x128xf32>,
    %c0_5 = arith.constant 0 : index
    %c0_6 = arith.constant 0 : index
    %c0_7 = arith.constant 0 : index
    %4 = vector.load %arg2[%c0_5, %c0_6, %c0_7] : memref<2x8x128xbf16, #tpu.memory_space<vmem>>, vector<2x8x128xbf16>
    %5 = arith.extf %4 : vector<2x8x128xbf16> to vector<2x8x128xf32>
    %cst_8 = arith.constant dense<0.000000e+00> : vector<2x128xf32>
    %6 = vector.multi_reduction <add>, %5, %cst_8 [1] : vector<2x8x128xf32> to vector<2x128xf32>
    %cst_9 = arith.constant 1.250000e-01 : f32
    %7 = vector.broadcast %cst_9 : f32 to vector<2x128xf32>
    %8 = arith.mulf %6, %7 : vector<2x128xf32>
    %9 = arith.truncf %8 : vector<2x128xf32> to vector<2x128xbf16>
    %c0_10 = arith.constant 0 : index
    %c0_11 = arith.constant 0 : index
    %10 = vector.load %arg3[%c0_10, %c0_11] : memref<128x128xbf16, #tpu.memory_space<vmem>>, vector<128x128xbf16>
    %cst_12 = arith.constant dense<0.000000e+00> : vector<2x128xf32>
    %11 = tpu.matmul %9, %10, %cst_12 {dimension_numbers = #tpu.dot_dimension_numbers<[1], [0], [0], [1], [0, 0, 1, 1], [], []>} : vector<2x128xbf16>, vector<128x128xbf16>, vector<2x128xf32> -> vector<2x128xf32>
    %c0_13 = arith.constant 0 : index
    %c0_14 = arith.constant 0 : index
    %12 = vector.load %arg5[%c0_13, %c0_14] : memref<2x128xf32, #tpu.memory_space<vmem>>, vector<2x128xf32>
    tpu.vector_store %arg5[%c0_13, %c0_14], %11 {strides = array<i32>} : memref<2x128xf32, #tpu.memory_space<vmem>>, vector<2x128xf32>,
    return
  }
}

</mosaic_0001>

<llo_original>
// kernel: classifier_forward.1
$region0: #{classifier_forward.1}
  #allocation0 [shape = 'u32[]', space=smem, size = 0x4, offset = 0x4, fixed_abs, tag = 'smem constant byte address 0x4 - core index']
  #allocation1 [shape = 'u32[72,128]{1,0:T(1,128)}', space=vmem, size = 0x9000, scoped, tag = 'internal scratch']
  %s0 = inlined_call_operand.vmem [shape: bf16[2,256], index: 0, kind: input, shape index: {}]
  %s1 = inlined_call_operand.vmem [shape: bf16[256,128], index: 1, kind: input, shape index: {}]
  %s2 = inlined_call_operand.vmem [shape: bf16[2,8,128], index: 2, kind: input, shape index: {}]
  %s3 = inlined_call_operand.vmem [shape: bf16[128,128], index: 3, kind: input, shape index: {}]
  %s4 = inlined_call_operand.hbm [shape: f32[2,128], index: 4, kind: output, shape index: {0}]
  %s5 = inlined_call_operand.hbm [shape: f32[2,128], index: 5, kind: output, shape index: {1}]
  %6 = xla_tuple %s4, %s5
  %s7 = sld [smem:[#allocation0]]
  $region34: #{classifier_forward.1} parent=0
    _
  %s9 = ssub.s32 1, %s7
  %s10 = scalar_select 0, %s9, %s7
  $region1: #{classifier_forward.1} parent=0
    #allocation2 [shape = 'u8[1024]{0}', space=vmem, size = 0x400, scoped, tag = 'output window, operand 0, single buffered']
    #allocation3 [shape = 's32[1]{0}', space=sflag, size = 0x4, scoped, tag = 'scoped memory for classifier_forward.1']
    #allocation4 [shape = 'u8[1024]{0}', space=vmem, size = 0x400, scoped, tag = 'output window, operand 1, single buffered']
    #allocation5 [shape = 's32[1]{0}', space=sflag, size = 0x4, scoped, tag = 'scoped memory for classifier_forward.1']
    %11 = vsyncpa [#allocation3], 0
    %12 = vsyncpa [#allocation5], 0
    // Predicated region
    $region2: #{classifier_forward.1} parent=1 // pred_check
      _
    $region3: #{classifier_forward.1} parent=1 // pred_check_branch
      %14 = sbr.rel (0) target = $region5
    $region4: #{classifier_forward.1} parent=1 // pred_region
      _
    $region5: #{classifier_forward.1} parent=1 // pred_fallthru
      _
    // Predicated region
    $region6: #{classifier_forward.1} parent=1 // pred_check
      _
    $region7: #{classifier_forward.1} parent=1 // pred_check_branch
      %16 = sbr.rel (0) target = $region9
    $region8: #{classifier_forward.1} parent=1 // pred_region
      _
    $region9: #{classifier_forward.1} parent=1 // pred_fallthru
      _
    // Predicated region
    $region10: #{classifier_forward.1} parent=1 // pred_check
      _
    $region11: #{classifier_forward.1} parent=1 // pred_check_branch
      %18 = sbr.rel (0) target = $region13
    $region12: #{classifier_forward.1} parent=1 // pred_region
      _
    $region13: #{classifier_forward.1} parent=1 // pred_fallthru
      _
    // Predicated region
    $region14: #{classifier_forward.1} parent=1 // pred_check
      _
    $region15: #{classifier_forward.1} parent=1 // pred_check_branch
      %20 = sbr.rel (0) target = $region17
    $region16: #{classifier_forward.1} parent=1 // pred_region
      _
    $region17: #{classifier_forward.1} parent=1 // pred_fallthru
      _
    %v21 = vld [vmem:[%s0] sm:$0x3]
    %v22 = vld [vmem:[%s1] sm:$0xf]
    %v23 = vld [vmem:[%s1 + $0x4] sm:$0xf]
    %v24 = vld [vmem:[%s1 + $0x8] sm:$0xf]
    %v25 = vld [vmem:[%s1 + $0xc] sm:$0xf]
    %v26 = vld [vmem:[%s1 + $0x10] sm:$0xf]
    %v27 = vld [vmem:[%s1 + $0x14] sm:$0xf]
    %v28 = vld [vmem:[%s1 + $0x18] sm:$0xf]
    %v29 = vld [vmem:[%s1 + $0x1c] sm:$0xf]
    %v30 = vld [vmem:[%s1 + $0x20] sm:$0xf]
    %v31 = vld [vmem:[%s1 + $0x24] sm:$0xf]
    %v32 = vld [vmem:[%s1 + $0x28] sm:$0xf]
    %v33 = vld [vmem:[%s1 + $0x2c] sm:$0xf]
    %v34 = vld [vmem:[%s1 + $0x30] sm:$0xf]
    %v35 = vld [vmem:[%s1 + $0x34] sm:$0xf]
    %v36 = vld [vmem:[%s1 + $0x38] sm:$0xf]
    %v37 = vld [vmem:[%s1 + $0x3c] sm:$0xf]
    %v38 = vld [vmem:[%s1 + $0x40] sm:$0xf]
    %v39 = vld [vmem:[%s1 + $0x44] sm:$0xf]
    %v40 = vld [vmem:[%s1 + $0x48] sm:$0xf]
    %v41 = vld [vmem:[%s1 + $0x4c] sm:$0xf]
    %v42 = vld [vmem:[%s1 + $0x50] sm:$0xf]
    %v43 = vld [vmem:[%s1 + $0x54] sm:$0xf]
    %v44 = vld [vmem:[%s1 + $0x58] sm:$0xf]
    %v45 = vld [vmem:[%s1 + $0x5c] sm:$0xf]
    %v46 = vld [vmem:[%s1 + $0x60] sm:$0xf]
    %v47 = vld [vmem:[%s1 + $0x64] sm:$0xf]
    %v48 = vld [vmem:[%s1 + $0x68] sm:$0xf]
    %v49 = vld [vmem:[%s1 + $0x6c] sm:$0xf]
    %v50 = vld [vmem:[%s1 + $0x70] sm:$0xf]
    %v51 = vld [vmem:[%s1 + $0x74] sm:$0xf]
    %v52 = vld [vmem:[%s1 + $0x78] sm:$0xf]
    %v53 = vld [vmem:[%s1 + $0x7c] sm:$0xf]
    %55 = vst [vmem:[#allocation1] ss:$9 sm:$0xff] %v21
    %v56 = vld [vmem:[#allocation1] sm:$0xff]
    %v57 = vld [vmem:[#allocation1 + $0x9] sm:$0xff]
    %v92 = vunpack.c.l.b16 %v22
    %v93 = vunpack.c.l.b16 %v23
    %v94 = vunpack.c.l.b16 %v24
    %v95 = vunpack.c.l.b16 %v25
    %v96 = vunpack.c.l.b16 %v26
    %v97 = vunpack.c.l.b16 %v27
    %v98 = vunpack.c.l.b16 %v28
    %v99 = vunpack.c.l.b16 %v29
    %v100 = vunpack.c.l.b16 %v30
    %v101 = vunpack.c.l.b16 %v31
    %v102 = vunpack.c.l.b16 %v32
    %v103 = vunpack.c.l.b16 %v33
    %v104 = vunpack.c.l.b16 %v34
    %v105 = vunpack.c.l.b16 %v35
    %v106 = vunpack.c.l.b16 %v36
    %v107 = vunpack.c.l.b16 %v37
    %v108 = vunpack.c.l.b16 %v38
    %v109 = vunpack.c.l.b16 %v39
    %v110 = vunpack.c.l.b16 %v40
    %v111 = vunpack.c.l.b16 %v41
    %v112 = vunpack.c.l.b16 %v42
    %v113 = vunpack.c.l.b16 %v43
    %v114 = vunpack.c.l.b16 %v44
    %v115 = vunpack.c.l.b16 %v45
    %v116 = vunpack.c.l.b16 %v46
    %v117 = vunpack.c.l.b16 %v47
    %v118 = vunpack.c.l.b16 %v48
    %v119 = vunpack.c.l.b16 %v49
    %v120 = vunpack.c.l.b16 %v50
    %v121 = vunpack.c.l.b16 %v51
    %v122 = vunpack.c.l.b16 %v52
    %v123 = vunpack.c.l.b16 %v53
    %v124 = vpack.c.b16 %v93, %v92
    %v125 = vpack.c.b16 %v95, %v94
    %v126 = vpack.c.b16 %v97, %v96
    %v127 = vpack.c.b16 %v99, %v98
    %v128 = vpack.c.b16 %v101, %v100
    %v129 = vpack.c.b16 %v103, %v102
    %v130 = vpack.c.b16 %v105, %v104
    %v131 = vpack.c.b16 %v107, %v106
    %v132 = vpack.c.b16 %v109, %v108
    %v133 = vpack.c.b16 %v111, %v110
    %v134 = vpack.c.b16 %v113, %v112
    %v135 = vpack.c.b16 %v115, %v114
    %v136 = vpack.c.b16 %v117, %v116
    %v137 = vpack.c.b16 %v119, %v118
    %v138 = vpack.c.b16 %v121, %v120
    %v139 = vpack.c.b16 %v123, %v122
    %156 = vmatpush.bf16.msra.mxu0 %v131
    %157 = vmatpush.bf16.msra.mxu0 %v130
    %158 = vmatpush.bf16.msra.mxu0 %v129
    %159 = vmatpush.bf16.msra.mxu0 %v128
    %160 = vmatpush.bf16.msra.mxu0 %v127
    %161 = vmatpush.bf16.msra.mxu0 %v126
    %162 = vmatpush.bf16.msra.mxu0 %v125
    %163 = vmatpush.bf16.msra.mxu0 %v124
    %164 = vmatmul.bf16.gmra.mxu0 %v56
    %v165 = vpop.f32.mrf.mxu0
    %v166 = vadd.f32 0.0, %v165
    %v167 = vpop.f32.mrf.mxu0
    %168 = vdwg.mxu0
    %169 = vmatpush.bf16.msra.mxu0 %v139
    %170 = vmatpush.bf16.msra.mxu0 %v138
    %171 = vmatpush.bf16.msra.mxu0 %v137
    %172 = vmatpush.bf16.msra.mxu0 %v136
    %173 = vmatpush.bf16.msra.mxu0 %v135
    %174 = vmatpush.bf16.msra.mxu0 %v134
    %175 = vmatpush.bf16.msra.mxu0 %v133
    %176 = vmatpush.bf16.msra.mxu0 %v132
    %177 = vmatmul.bf16.gmra.mxu0 %v57
    %v178 = vpop.f32.mrf.mxu0
    %v179 = vadd.f32 %v166, %v178
    %v180 = vpop.f32.mrf.mxu0
    %181 = vdwg.mxu0
    %182 = vst [vmem:[#allocation2] sm:$0x3] %v179
    %v183 = vld [vmem:[%s2] sm:$0xf]
    %v184 = vld [vmem:[%s2 + $0x4] sm:$0xf]
    %v185 = vunpack.c.l.bf16 %v183
    %v186 = vunpack.c.l.bf16 %v184
    %v187 = vrot.slane %v185, 4
    %v188 = vadd.f32 %v185, %v187
    %v189 = vrot.slane %v188, 2
    %v190 = vadd.f32 %v188, %v189
    %v191 = vrot.slane %v190, 1
    %v192 = vadd.f32 %v190, %v191
    %v193 = vrot.slane %v186, 4
    %v194 = vadd.f32 %v186, %v193
    %v195 = vrot.slane %v194, 2
    %v196 = vadd.f32 %v194, %v195
    %v197 = vrot.slane %v196, 1
    %v198 = vadd.f32 %v196, %v197
    %v199 = vmul.f32 %v192, 0.125
    %v200 = vmul.f32 %v198, 0.125
    %v201 = vpack.c.bf16 %v199, %v199
    %v202 = vpack.c.bf16 %v200, %v200
    %v203 = vld [vmem:[%s3] sm:$0xf]
    %v204 = vld [vmem:[%s3 + $0x4] sm:$0xf]
    %v205 = vld [vmem:[%s3 + $0x8] sm:$0xf]
    %v206 = vld [vmem:[%s3 + $0xc] sm:$0xf]
    %v207 = vld [vmem:[%s3 + $0x10] sm:$0xf]
    %v208 = vld [vmem:[%s3 + $0x14] sm:$0xf]
    %v209 = vld [vmem:[%s3 + $0x18] sm:$0xf]
    %v210 = vld [vmem:[%s3 + $0x1c] sm:$0xf]
    %v211 = vld [vmem:[%s3 + $0x20] sm:$0xf]
    %v212 = vld [vmem:[%s3 + $0x24] sm:$0xf]
    %v213 = vld [vmem:[%s3 + $0x28] sm:$0xf]
    %v214 = vld [vmem:[%s3 + $0x2c] sm:$0xf]
    %v215 = vld [vmem:[%s3 + $0x30] sm:$0xf]
    %v216 = vld [vmem:[%s3 + $0x34] sm:$0xf]
    %v217 = vld [vmem:[%s3 + $0x38] sm:$0xf]
    %v218 = vld [vmem:[%s3 + $0x3c] sm:$0xf]
    %v221 = vunpack.c.l.b16 %v201
    %v222 = vunpack.c.l.b16 %v202
    %vm223 = vcmask 1041409
    %v224 = vsel %vm223, %v222, %v221
    %v225 = vpack.c.b16 %v224, %v224
    %v243 = vunpack.c.l.b16 %v203
    %v244 = vunpack.c.l.b16 %v204
    %v245 = vunpack.c.l.b16 %v205
    %v246 = vunpack.c.l.b16 %v206
    %v247 = vunpack.c.l.b16 %v207
    %v248 = vunpack.c.l.b16 %v208
    %v249 = vunpack.c.l.b16 %v209
    %v250 = vunpack.c.l.b16 %v210
    %v251 = vunpack.c.l.b16 %v211
    %v252 = vunpack.c.l.b16 %v212
    %v253 = vunpack.c.l.b16 %v213
    %v254 = vunpack.c.l.b16 %v214
    %v255 = vunpack.c.l.b16 %v215
    %v256 = vunpack.c.l.b16 %v216
    %v257 = vunpack.c.l.b16 %v217
    %v258 = vunpack.c.l.b16 %v218
    %v259 = vpack.c.b16 %v244, %v243
    %v260 = vpack.c.b16 %v246, %v245
    %v261 = vpack.c.b16 %v248, %v247
    %v262 = vpack.c.b16 %v250, %v249
    %v263 = vpack.c.b16 %v252, %v251
    %v264 = vpack.c.b16 %v254, %v253
    %v265 = vpack.c.b16 %v256, %v255
    %v266 = vpack.c.b16 %v258, %v257
    %275 = vmatpush.bf16.msra.mxu0 %v266
    %276 = vmatpush.bf16.msra.mxu0 %v265
    %277 = vmatpush.bf16.msra.mxu0 %v264
    %278 = vmatpush.bf16.msra.mxu0 %v263
    %279 = vmatpush.bf16.msra.mxu0 %v262
    %280 = vmatpush.bf16.msra.mxu0 %v261
    %281 = vmatpush.bf16.msra.mxu0 %v260
    %282 = vmatpush.bf16.msra.mxu0 %v259
    %283 = vmatmul.bf16.gmra.mxu0 %v225
    %v284 = vpop.f32.mrf.mxu0
    %v285 = vadd.f32 0.0, %v284
    %v286 = vpop.f32.mrf.mxu0
    %287 = vdwg.mxu0
    %288 = vst [vmem:[#allocation4] sm:$0x3] %v285
    // Predicated region
    $region18: #{classifier_forward.1} parent=1 // pred_check
      _
    $region19: #{classifier_forward.1} parent=1 // pred_check_branch
      %290 = sbr.rel (0) target = $region21
    $region20: #{classifier_forward.1} parent=1 // pred_region
      %292 = vsyncadd [#allocation3], 0
      %s294 = sshll.u32 [#allocation2], 4
      %s295 = int_to_ptr.vmem [resolvable:$true] %s294
      %s296 = sshll.u32 %s4, 4
      %s297 = int_to_ptr.hbm [resolvable:$true] %s296
      %299 = dma.vmem_to_hbm [thread:$0]  %s295, 32, %s297, [#allocation3]
    $region21: #{classifier_forward.1} parent=1 // pred_fallthru
      _
    // Predicated region
    $region22: #{classifier_forward.1} parent=1 // pred_check
      _
    $region23: #{classifier_forward.1} parent=1 // pred_check_branch
      %301 = sbr.rel (0) target = $region25
    $region24: #{classifier_forward.1} parent=1 // pred_region
      %303 = vsyncadd [#allocation5], 0
      %s305 = sshll.u32 [#allocation4], 4
      %s306 = int_to_ptr.vmem [resolvable:$true] %s305
      %s307 = sshll.u32 %s5, 4
      %s308 = int_to_ptr.hbm [resolvable:$true] %s307
      %310 = dma.vmem_to_hbm [thread:$0]  %s306, 32, %s308, [#allocation5]
    $region25: #{classifier_forward.1} parent=1 // pred_fallthru
      _
    // Predicated region
    $region26: #{classifier_forward.1} parent=1 // pred_check
      _
    $region27: #{classifier_forward.1} parent=1 // pred_check_branch
      %312 = sbr.rel (0) target = $region29
    $region28: #{classifier_forward.1} parent=1 // pred_region
      %314 = dma.done [#allocation3], 32
    $region29: #{classifier_forward.1} parent=1 // pred_fallthru
      _
    // Predicated region
    $region30: #{classifier_forward.1} parent=1 // pred_check
      _
    $region31: #{classifier_forward.1} parent=1 // pred_check_branch
      %316 = sbr.rel (0) target = $region33
    $region32: #{classifier_forward.1} parent=1 // pred_region
      %318 = dma.done [#allocation5], 32
    $region33: #{classifier_forward.1} parent=1 // pred_fallthru
      _
    %319 = vsyncpa [#allocation3], 1
    %320 = vsyncpa [#allocation5], 1

</llo_original>
